<compile_context>
chip_gen: v6e
topology: v6e:2x2x1
jax: 0.10.0
libtpu: 0.0.40
codegen_flags: <defaults>
</compile_context>

<pallas_src>
import functools
import math

import jax
import jax.numpy as jnp
from jax import lax
from jax.experimental import pallas as pl
from jax.experimental.pallas import tpu as pltpu


# --------------------------------------------------------------------------------------
# Kernel 1: whole-batch MLP body + regressor + relaxed-Bernoulli mixing  ->  A (N, 8)
# --------------------------------------------------------------------------------------
def _mlp_affine_kernel(z_ref, w1_ref, w2_ref, w3_ref, gb_ref, u_ref, a_ref, *,
                       scale, offset, temp, dropout_p, eps, d_in):
    hidden = w2_ref.shape[0]
    keep = 1.0 - dropout_p

    def bn_lrelu_drop(h, gamma, beta, u):
        # BatchNorm1d(track_running_stats=False): always batch stats, biased variance.
        mean = jnp.mean(h, axis=0, keepdims=True)
        var = jnp.mean((h - mean) ** 2, axis=0, keepdims=True)
        h = (h - mean) * lax.rsqrt(var + eps) * gamma + beta
        h = jnp.maximum(h, 0.2 * h)                              # LeakyReLU(0.2)
        return jnp.where(u < keep, h * (1.0 / keep), 0.0)        # inverted dropout

    # z layout: [onehot(c) | noise | logits[c] | u_bernoulli]  -> (N, d_in + 2)
    z = z_ref[...]
    h = jnp.dot(z, w1_ref[...], preferred_element_type=jnp.float32)
    h = bn_lrelu_drop(h, gb_ref[0:1, :], gb_ref[1:2, :], u_ref[:, :hidden])
    h = jnp.dot(h, w2_ref[...], preferred_element_type=jnp.float32)
    h = bn_lrelu_drop(h, gb_ref[2:3, :], gb_ref[3:4, :], u_ref[:, hidden:2 * hidden])
    a = jnp.dot(h, w3_ref[...], preferred_element_type=jnp.float32)   # (N, 8), cols 6..7 pad

    # i_matrix [[1,0,0],[0,1,0]] flattened and padded to 8 lanes, built from an iota
    # (no captured array constants inside the kernel).
    cidx = lax.broadcasted_iota(jnp.int32, (1, 8), 1)
    i_flat = jnp.where((cidx == 0) | (cidx == 4), 1.0, 0.0)

    # g_scale_unlimited=False branch.
    a = scale * (jax.nn.sigmoid(a) - offset) + i_flat

    # sampling(): relaxed Bernoulli (BinConcrete) with per-sample logits[c], relax=True.
    logit = z[:, d_in:d_in + 1]                                   # (N, 1)
    u = jnp.clip(z[:, d_in + 1:d_in + 2], 1e-6, 1.0 - 1e-6)       # (N, 1)
    logistic = jnp.log(u) - jnp.log(1.0 - u)
    prob = jax.nn.sigmoid((logistic + logit) / temp)              # (N, 1)
    a_ref[...] = (1.0 - prob) * i_flat + prob * a


# --------------------------------------------------------------------------------------
# Kernel 2: pixel-tiled affine_grid.  Grid over the flattened 2*H*W axis; coords built
# in-kernel from iotas; grid tile = A(N,8) @ coords(8,TL) on the MXU.
# grid_flat[n, (h*W + w)*2 + {0,1}] = (gx, gy) at pixel (h, w)  (F.affine_grid layout).
# --------------------------------------------------------------------------------------
def _affine_grid_kernel(a_ref, g_ref, *, h_img, w_img, tile):
    t = pl.program_id(0)
    q = lax.broadcasted_iota(jnp.int32, (1, tile), 1) + t * tile  # global flat index
    p = q // 2                                                     # pixel index h*W + w
    ch = q - 2 * p                                                 # 0 -> gx lane, 1 -> gy lane
    row = p // w_img
    col = p - row * w_img
    # align_corners=False pixel centers.
    x = (2.0 * col.astype(jnp.float32) + 1.0) * (1.0 / w_img) - 1.0
    y = (2.0 * row.astype(jnp.float32) + 1.0) * (1.0 / h_img) - 1.0
    is_x = (ch == 0).astype(jnp.float32)
    is_y = 1.0 - is_x

    xy1 = jnp.concatenate([x, y, jnp.ones_like(x)], axis=0)        # (3, TL)
    coords = jnp.concatenate(
        [xy1 * is_x, xy1 * is_y, jnp.zeros((2, tile), jnp.float32)], axis=0)  # (8, TL)
    g_ref[...] = jnp.dot(a_ref[...], coords, preferred_element_type=jnp.float32)


def _pick_pixel_tile(hw2):
    """Largest 128-multiple tile that divides 2*H*W and yields >= 2 grid steps."""
    for tl in (2048, 1024, 512, 256, 128):
        if hw2 % tl == 0 and hw2 // tl >= 2:
            return tl
    return hw2  # fall back to a single block


def init_params(key, n_dim=32, n_classes=10):
    """Deterministic parameter init matching the module's shapes.

    NOTE: the module's reset() zeros the regressor weight and logits (degenerate
    output); small deterministic random values are used instead so the kernel path
    is numerically exercised. kaiming_normal_(a=0.2, mode='fan_out') for body linears.
    """
    hidden = 4 * n_dim
    d_in = n_dim + n_classes
    a = 0.2
    gain = math.sqrt(2.0 / (1.0 + a * a))
    k1, k2, k3, k4 = jax.random.split(key, 4)
    # torch Linear weight is (out, in); kernel expects (in, out), i.e. already transposed.
    w1 = jax.random.normal(k1, (d_in, hidden), jnp.float32) * (gain / math.sqrt(hidden))
    w2 = jax.random.normal(k2, (hidden, hidden), jnp.float32) * (gain / math.sqrt(hidden))
    w3 = jax.random.normal(k3, (hidden, 6), jnp.float32) * 0.01
    logits = jax.random.normal(k4, (n_classes,), jnp.float32) * 0.1
    return dict(
        w1=w1, w2=w2, w3=w3, logits=logits,
        g1=jnp.ones((1, hidden), jnp.float32), b1=jnp.zeros((1, hidden), jnp.float32),
        g2=jnp.ones((1, hidden), jnp.float32), b2=jnp.zeros((1, hidden), jnp.float32),
    )


def geometric_augmentation_forward(x, noise, c, params, rng_key, *,
                                   n_classes=10, scale=0.5, offset=-0.5,
                                   temp=0.05, dropout_p=0.8):
    N = noise.shape[0]
    h_img, w_img = x.shape[2], x.shape[3]
    hidden = params["w1"].shape[1]
    hw2 = 2 * h_img * w_img

    # with_context=True: concat one-hot class with the noise vector (glue).
    onehot = jax.nn.one_hot(c, n_classes, dtype=jnp.float32)
    z = jnp.concatenate([onehot, noise], axis=1)                   # (N, n_classes + n_dim)
    d_in = z.shape[1]

    # Randomness drawn host-side (TPU HW PRNG has no interpret/CPU lowering).
    k1, k2 = jax.random.split(rng_key, 2)
    u_drop = jax.random.uniform(k1, (N, 2 * hidden), jnp.float32)  # both dropout masks
    u_bern = jax.random.uniform(k2, (N, 1), jnp.float32)           # relaxed-Bernoulli draw

    # Fold per-sample scalars (logits[c], Bernoulli uniform) into z as trailing columns;
    # w1 gets matching zero rows so the matmul is unaffected.
    logit_sel = params["logits"][c].reshape(N, 1)
    z_aug = jnp.concatenate([z, logit_sel, u_bern], axis=1)        # (N, d_in + 2)
    w1p = jnp.concatenate([params["w1"], jnp.zeros((2, hidden), jnp.float32)], axis=0)
    w3p = jnp.pad(params["w3"], ((0, 0), (0, 2)))                  # (hidden, 8), lane-padded
    gb = jnp.concatenate([params["g1"], params["b1"], params["g2"], params["b2"]], axis=0)

    on_tpu = jax.default_backend() == "tpu"
    vmem = pl.BlockSpec(memory_space=pltpu.MemorySpace.VMEM)

    # ---------------- Kernel 1: whole-batch MLP -> A (N, 8) ----------------
    mlp_kernel = functools.partial(
        _mlp_affine_kernel, scale=scale, offset=offset, temp=temp,
        dropout_p=dropout_p, eps=1e-5, d_in=d_in)

    a_full = pl.pallas_call(
        mlp_kernel,
        out_shape=jax.ShapeDtypeStruct((N, 8), jnp.float32),
        in_specs=[vmem] * 6,
        out_specs=vmem,
        compiler_params=(pltpu.CompilerParams(vmem_limit_bytes=32 * 1024 * 1024)
                         if on_tpu else None),
    )(z_aug, w1p, params["w2"], w3p, gb, u_drop)

    # ---------------- Kernel 2: pixel-tiled affine_grid ----------------
    tl = _pick_pixel_tile(hw2)
    n_tiles = hw2 // tl
    grid_kernel = functools.partial(_affine_grid_kernel, h_img=h_img, w_img=w_img, tile=tl)

    # VMEM budget: double-buffered (N_pad, TL) output tiles + resident A + coords scratch.
    n_pad = max(N, 8)
    vmem_need = 2 * n_pad * tl * 4 + 2 * 8 * tl * 4 + 8 * 128 * 4 + (1 << 20)
    cparams = None
    if on_tpu:
        cparams = pltpu.CompilerParams(
            dimension_semantics=("parallel",),   # shard pixel tiles across v7x's 2 TCs
            vmem_limit_bytes=int(min(100 << 20, max(vmem_need, 4 << 20))))

    grid_flat = pl.pallas_call(
        grid_kernel,
        out_shape=jax.ShapeDtypeStruct((N, hw2), jnp.float32),     # lane-dense grid slab
        grid=(n_tiles,),
        in_specs=[pl.BlockSpec((N, 8), lambda i: (0, 0))],
        out_specs=pl.BlockSpec((N, tl), lambda i: (0, i)),
        compiler_params=cparams,
        cost_estimate=pl.CostEstimate(
            flops=2 * N * 8 * hw2, transcendentals=0,
            bytes_accessed=4 * (N * hw2 + N * 8)),
    )(a_full)

    grid_out = grid_flat.reshape(N, h_img, w_img, 2)               # F.affine_grid layout
    A = a_full[:, :6].reshape(N, 2, 3)
    return grid_out, A


if __name__ == "__main__":
    key = jax.random.PRNGKey(0)
    kp, kx, kn, kc, kr = jax.random.split(key, 5)

    N, C, H_IMG, W_IMG = 8, 3, 16, 16
    N_DIM, N_CLASSES = 32, 10                                      # hidden = 4 * n_dim = 128

    params = init_params(kp, n_dim=N_DIM, n_classes=N_CLASSES)
    x = jax.random.normal(kx, (N, C, H_IMG, W_IMG), jnp.float32)   # NCHW, used only for shape
    noise = jax.random.normal(kn, (N, N_DIM), jnp.float32)
    c = jax.random.randint(kc, (N,), 0, N_CLASSES)

    grid, A = geometric_augmentation_forward(x, noise, c, params, kr,
                                             n_classes=N_CLASSES)
    jax.block_until_ready((grid, A))

    assert grid.shape == (N, H_IMG, W_IMG, 2)
    assert A.shape == (N, 2, 3)
    assert bool(jnp.all(jnp.isfinite(grid))) and bool(jnp.all(jnp.isfinite(A)))
    print("KERNEL_OK")
</pallas_src>

<mosaic_0001>
module attributes {stable_mosaic.version = 11 : i64} {
  func.func @_mlp_affine_kernel(%arg0: memref<8x44xf32, #tpu.memory_space<vmem>>, %arg1: memref<44x128xf32, #tpu.memory_space<vmem>>, %arg2: memref<128x128xf32, #tpu.memory_space<vmem>>, %arg3: memref<128x8xf32, #tpu.memory_space<vmem>>, %arg4: memref<4x128xf32, #tpu.memory_space<vmem>>, %arg5: memref<8x256xf32, #tpu.memory_space<vmem>>, %arg6: memref<8x8xf32, #tpu.memory_space<vmem>>) attributes {dimension_semantics = [], scalar_prefetch = 0 : i64, scratch_operands = 0 : i64, tpu.core_type = #tpu.core_type<tc>} {
    %c0 = arith.constant 0 : index
    %c0_0 = arith.constant 0 : index
    %0 = vector.load %arg0[%c0, %c0_0] : memref<8x44xf32, #tpu.memory_space<vmem>>, vector<8x44xf32>
    %c0_1 = arith.constant 0 : index
    %c0_2 = arith.constant 0 : index
    %1 = vector.load %arg1[%c0_1, %c0_2] : memref<44x128xf32, #tpu.memory_space<vmem>>, vector<44x128xf32>
    %cst = arith.constant dense<0.000000e+00> : vector<8x128xf32>
    %2 = tpu.matmul %0, %1, %cst {dimension_numbers = #tpu.dot_dimension_numbers<[1], [0], [0], [1], [0, 0, 1, 1], [], []>} : vector<8x44xf32>, vector<44x128xf32>, vector<8x128xf32> -> vector<8x128xf32>
    %c0_3 = arith.constant 0 : index
    %c0_4 = arith.constant 0 : index
    %3 = vector.load %arg4[%c0_3, %c0_4] : memref<4x128xf32, #tpu.memory_space<vmem>>, vector<1x128xf32>
    %c1 = arith.constant 1 : index
    %c0_5 = arith.constant 0 : index
    %4 = vector.load %arg4[%c1, %c0_5] : memref<4x128xf32, #tpu.memory_space<vmem>>, vector<1x128xf32>
    %c0_6 = arith.constant 0 : index
    %c0_7 = arith.constant 0 : index
    %5 = vector.load %arg5[%c0_6, %c0_7] : memref<8x256xf32, #tpu.memory_space<vmem>>, vector<8x128xf32>
    %cst_8 = arith.constant dense<0.000000e+00> : vector<128xf32>
    %6 = vector.multi_reduction <add>, %2, %cst_8 [0] : vector<8x128xf32> to vector<128xf32>
    %7 = vector.shape_cast %6 : vector<128xf32> to vector<1x128xf32>
    %cst_9 = arith.constant 8.000000e+00 : f32
    %8 = vector.broadcast %cst_9 : f32 to vector<1x128xf32>
    %9 = arith.divf %7, %8 : vector<1x128xf32>
    %10 = vector.broadcast %9 : vector<1x128xf32> to vector<8x128xf32>
    %11 = arith.subf %2, %10 : vector<8x128xf32>
    %12 = arith.mulf %11, %11 : vector<8x128xf32>
    %cst_10 = arith.constant dense<0.000000e+00> : vector<128xf32>
    %13 = vector.multi_reduction <add>, %12, %cst_10 [0] : vector<8x128xf32> to vector<128xf32>
    %14 = vector.shape_cast %13 : vector<128xf32> to vector<1x128xf32>
    %cst_11 = arith.constant 8.000000e+00 : f32
    %15 = vector.broadcast %cst_11 : f32 to vector<1x128xf32>
    %16 = arith.divf %14, %15 : vector<1x128xf32>
    %17 = vector.broadcast %9 : vector<1x128xf32> to vector<8x128xf32>
    %18 = arith.subf %2, %17 : vector<8x128xf32>
    %cst_12 = arith.constant 9.99999974E-6 : f32
    %19 = vector.broadcast %cst_12 : f32 to vector<1x128xf32>
    %20 = arith.addf %16, %19 : vector<1x128xf32>
    %21 = math.rsqrt %20 : vector<1x128xf32>
    %22 = vector.broadcast %21 : vector<1x128xf32> to vector<8x128xf32>
    %23 = arith.mulf %18, %22 : vector<8x128xf32>
    %24 = vector.broadcast %3 : vector<1x128xf32> to vector<8x128xf32>
    %25 = arith.mulf %23, %24 : vector<8x128xf32>
    %26 = vector.broadcast %4 : vector<1x128xf32> to vector<8x128xf32>
    %27 = arith.addf %25, %26 : vector<8x128xf32>
    %cst_13 = arith.constant 2.000000e-01 : f32
    %28 = vector.broadcast %cst_13 : f32 to vector<8x128xf32>
    %29 = arith.mulf %28, %27 : vector<8x128xf32>
    %30 = arith.maximumf %27, %29 : vector<8x128xf32>
    %cst_14 = arith.constant 2.000000e-01 : f32
    %31 = vector.broadcast %cst_14 : f32 to vector<8x128xf32>
    %32 = arith.cmpf olt, %5, %31 : vector<8x128xf32>
    %cst_15 = arith.constant 5.000000e+00 : f32
    %33 = vector.broadcast %cst_15 : f32 to vector<8x128xf32>
    %34 = arith.mulf %30, %33 : vector<8x128xf32>
    %cst_16 = arith.constant 0.000000e+00 : f32
    %35 = vector.broadcast %cst_16 : f32 to vector<8x128xf32>
    %36 = arith.select %32, %34, %35 : vector<8x128xi1>, vector<8x128xf32>
    %c0_17 = arith.constant 0 : index
    %c0_18 = arith.constant 0 : index
    %37 = vector.load %arg2[%c0_17, %c0_18] : memref<128x128xf32, #tpu.memory_space<vmem>>, vector<128x128xf32>
    %cst_19 = arith.constant dense<0.000000e+00> : vector<8x128xf32>
    %38 = tpu.matmul %36, %37, %cst_19 {dimension_numbers = #tpu.dot_dimension_numbers<[1], [0], [0], [1], [0, 0, 1, 1], [], []>} : vector<8x128xf32>, vector<128x128xf32>, vector<8x128xf32> -> vector<8x128xf32>
    %c2 = arith.constant 2 : index
    %c0_20 = arith.constant 0 : index
    %39 = vector.load %arg4[%c2, %c0_20] : memref<4x128xf32, #tpu.memory_space<vmem>>, vector<1x128xf32>
    %c3 = arith.constant 3 : index
    %c0_21 = arith.constant 0 : index
    %40 = vector.load %arg4[%c3, %c0_21] : memref<4x128xf32, #tpu.memory_space<vmem>>, vector<1x128xf32>
    %c0_22 = arith.constant 0 : index
    %c128 = arith.constant 128 : index
    %41 = vector.load %arg5[%c0_22, %c128] : memref<8x256xf32, #tpu.memory_space<vmem>>, vector<8x128xf32>
    %cst_23 = arith.constant dense<0.000000e+00> : vector<128xf32>
    %42 = vector.multi_reduction <add>, %38, %cst_23 [0] : vector<8x128xf32> to vector<128xf32>
    %43 = vector.shape_cast %42 : vector<128xf32> to vector<1x128xf32>
    %cst_24 = arith.constant 8.000000e+00 : f32
    %44 = vector.broadcast %cst_24 : f32 to vector<1x128xf32>
    %45 = arith.divf %43, %44 : vector<1x128xf32>
    %46 = vector.broadcast %45 : vector<1x128xf32> to vector<8x128xf32>
    %47 = arith.subf %38, %46 : vector<8x128xf32>
    %48 = arith.mulf %47, %47 : vector<8x128xf32>
    %cst_25 = arith.constant dense<0.000000e+00> : vector<128xf32>
    %49 = vector.multi_reduction <add>, %48, %cst_25 [0] : vector<8x128xf32> to vector<128xf32>
    %50 = vector.shape_cast %49 : vector<128xf32> to vector<1x128xf32>
    %cst_26 = arith.constant 8.000000e+00 : f32
    %51 = vector.broadcast %cst_26 : f32 to vector<1x128xf32>
    %52 = arith.divf %50, %51 : vector<1x128xf32>
    %53 = vector.broadcast %45 : vector<1x128xf32> to vector<8x128xf32>
    %54 = arith.subf %38, %53 : vector<8x128xf32>
    %cst_27 = arith.constant 9.99999974E-6 : f32
    %55 = vector.broadcast %cst_27 : f32 to vector<1x128xf32>
    %56 = arith.addf %52, %55 : vector<1x128xf32>
    %57 = math.rsqrt %56 : vector<1x128xf32>
    %58 = vector.broadcast %57 : vector<1x128xf32> to vector<8x128xf32>
    %59 = arith.mulf %54, %58 : vector<8x128xf32>
    %60 = vector.broadcast %39 : vector<1x128xf32> to vector<8x128xf32>
    %61 = arith.mulf %59, %60 : vector<8x128xf32>
    %62 = vector.broadcast %40 : vector<1x128xf32> to vector<8x128xf32>
    %63 = arith.addf %61, %62 : vector<8x128xf32>
    %cst_28 = arith.constant 2.000000e-01 : f32
    %64 = vector.broadcast %cst_28 : f32 to vector<8x128xf32>
    %65 = arith.mulf %64, %63 : vector<8x128xf32>
    %66 = arith.maximumf %63, %65 : vector<8x128xf32>
    %cst_29 = arith.constant 2.000000e-01 : f32
    %67 = vector.broadcast %cst_29 : f32 to vector<8x128xf32>
    %68 = arith.cmpf olt, %41, %67 : vector<8x128xf32>
    %cst_30 = arith.constant 5.000000e+00 : f32
    %69 = vector.broadcast %cst_30 : f32 to vector<8x128xf32>
    %70 = arith.mulf %66, %69 : vector<8x128xf32>
    %cst_31 = arith.constant 0.000000e+00 : f32
    %71 = vector.broadcast %cst_31 : f32 to vector<8x128xf32>
    %72 = arith.select %68, %70, %71 : vector<8x128xi1>, vector<8x128xf32>
    %c0_32 = arith.constant 0 : index
    %c0_33 = arith.constant 0 : index
    %73 = vector.load %arg3[%c0_32, %c0_33] : memref<128x8xf32, #tpu.memory_space<vmem>>, vector<128x8xf32>
    %cst_34 = arith.constant dense<0.000000e+00> : vector<8x8xf32>
    %74 = tpu.matmul %72, %73, %cst_34 {dimension_numbers = #tpu.dot_dimension_numbers<[1], [0], [0], [1], [0, 0, 1, 1], [], []>} : vector<8x128xf32>, vector<128x8xf32>, vector<8x8xf32> -> vector<8x8xf32>
    %75 = tpu.iota {dimensions = array<i32: 1>} : vector<1x8xi32>
    %c0_i32 = arith.constant 0 : i32
    %76 = vector.broadcast %c0_i32 : i32 to vector<1x8xi32>
    %77 = arith.cmpi eq, %75, %76 : vector<1x8xi32>
    %c4_i32 = arith.constant 4 : i32
    %78 = vector.broadcast %c4_i32 : i32 to vector<1x8xi32>
    %79 = arith.cmpi eq, %75, %78 : vector<1x8xi32>
    %80 = arith.ori %77, %79 : vector<1x8xi1>
    %cst_35 = arith.constant 1.000000e+00 : f32
    %cst_36 = arith.constant 0.000000e+00 : f32
    %81 = vector.broadcast %cst_35 : f32 to vector<1x8xf32>
    %82 = vector.broadcast %cst_36 : f32 to vector<1x8xf32>
    %83 = arith.select %80, %81, %82 : vector<1x8xi1>, vector<1x8xf32>
    %84 = arith.negf %74 : vector<8x8xf32>
    %85 = math.exp %84 : vector<8x8xf32>
    %cst_37 = arith.constant 1.000000e+00 : f32
    %86 = vector.broadcast %cst_37 : f32 to vector<8x8xf32>
    %87 = arith.addf %86, %85 : vector<8x8xf32>
    %88 = arith.divf %86, %87 : vector<8x8xf32>
    %cst_38 = arith.constant -5.000000e-01 : f32
    %89 = vector.broadcast %cst_38 : f32 to vector<8x8xf32>
    %90 = arith.subf %88, %89 : vector<8x8xf32>
    %cst_39 = arith.constant 5.000000e-01 : f32
    %91 = vector.broadcast %cst_39 : f32 to vector<8x8xf32>
    %92 = arith.mulf %91, %90 : vector<8x8xf32>
    %93 = vector.broadcast %83 : vector<1x8xf32> to vector<8x8xf32>
    %94 = arith.addf %92, %93 : vector<8x8xf32>
    %95 = vector.extract_strided_slice %0 {offsets = [0, 42], sizes = [8, 1], strides = [1, 1]} : vector<8x44xf32> to vector<8x1xf32>
    %96 = vector.extract_strided_slice %0 {offsets = [0, 43], sizes = [8, 1], strides = [1, 1]} : vector<8x44xf32> to vector<8x1xf32>
    %cst_40 = arith.constant 9.99999997E-7 : f32
    %cst_41 = arith.constant 0.999998986 : f32
    %97 = vector.broadcast %cst_40 : f32 to vector<8x1xf32>
    %98 = arith.maximumf %97, %96 : vector<8x1xf32>
    %99 = vector.broadcast %cst_41 : f32 to vector<8x1xf32>
    %100 = arith.minimumf %99, %98 : vector<8x1xf32>
    %101 = math.log %100 : vector<8x1xf32>
    %cst_42 = arith.constant 1.000000e+00 : f32
    %102 = vector.broadcast %cst_42 : f32 to vector<8x1xf32>
    %103 = arith.subf %102, %100 : vector<8x1xf32>
    %104 = math.log %103 : vector<8x1xf32>
    %105 = arith.subf %101, %104 : vector<8x1xf32>
    %106 = arith.addf %105, %95 : vector<8x1xf32>
    %cst_43 = arith.constant 5.000000e-02 : f32
    %107 = vector.broadcast %cst_43 : f32 to vector<8x1xf32>
    %108 = arith.divf %106, %107 : vector<8x1xf32>
    %109 = arith.negf %108 : vector<8x1xf32>
    %110 = math.exp %109 : vector<8x1xf32>
    %cst_44 = arith.constant 1.000000e+00 : f32
    %111 = vector.broadcast %cst_44 : f32 to vector<8x1xf32>
    %112 = arith.addf %111, %110 : vector<8x1xf32>
    %113 = arith.divf %111, %112 : vector<8x1xf32>
    %cst_45 = arith.constant 1.000000e+00 : f32
    %114 = vector.broadcast %cst_45 : f32 to vector<8x1xf32>
    %115 = arith.subf %114, %113 : vector<8x1xf32>
    %116 = vector.broadcast %115 : vector<8x1xf32> to vector<8x8xf32>
    %117 = vector.broadcast %83 : vector<1x8xf32> to vector<8x8xf32>
    %118 = arith.mulf %116, %117 : vector<8x8xf32>
    %119 = vector.broadcast %113 : vector<8x1xf32> to vector<8x8xf32>
    %120 = arith.mulf %119, %94 : vector<8x8xf32>
    %121 = arith.addf %118, %120 : vector<8x8xf32>
    %c0_46 = arith.constant 0 : index
    %c0_47 = arith.constant 0 : index
    %122 = vector.load %arg6[%c0_46, %c0_47] : memref<8x8xf32, #tpu.memory_space<vmem>>, vector<8x8xf32>
    tpu.vector_store %arg6[%c0_46, %c0_47], %121 {strides = array<i32>} : memref<8x8xf32, #tpu.memory_space<vmem>>, vector<8x8xf32>,
    return
  }
}

</mosaic_0001>

<llo_original>
// kernel: tpu_custom_call.1
$region0: #{tpu_custom_call.1}
  #allocation0 [shape = 'u32[]', space=smem, size = 0x4, offset = 0x4, fixed_abs, tag = 'smem constant byte address 0x4 - core index']
  #allocation1 [shape = 'u32[144,128]{1,0:T(1,128)}', space=vmem, size = 0x12000, scoped, tag = 'internal scratch']
  %s0 = inlined_call_operand.hbm [shape: f32[8,44], index: 0, kind: input, shape index: {}]
  %s1 = inlined_call_operand.hbm [shape: f32[44,128], index: 1, kind: input, shape index: {}]
  %s2 = inlined_call_operand.vmem [shape: f32[128,128], index: 2, kind: input, shape index: {}]
  %s3 = inlined_call_operand.vmem [shape: f32[128,8], index: 3, kind: input, shape index: {}]
  %s4 = inlined_call_operand.hbm [shape: f32[4,128], index: 4, kind: input, shape index: {}]
  %s5 = inlined_call_operand.vmem [shape: f32[8,256], index: 5, kind: input, shape index: {}]
  %s6 = inlined_call_operand.hbm [shape: f32[8,8], index: 6, kind: output, shape index: {}]
  %s7 = sld [smem:[#allocation0]]
  $region46: #{tpu_custom_call.1} parent=0
    _
  %s9 = ssub.s32 1, %s7
  %s10 = scalar_select 0, %s9, %s7
  $region1: #{tpu_custom_call.1} parent=0
    #allocation2 [shape = 'u8[4096]{0}', space=vmem, size = 0x1000, scoped, tag = 'input window, operand 0, single buffered']
    #allocation3 [shape = 's32[1]{0}', space=sflag, size = 0x4, scoped, tag = 'scoped memory for tpu_custom_call.1']
    #allocation4 [shape = 's32[1]{0}', space=sflag, size = 0x4, scoped, tag = 'scoped memory for tpu_custom_call.1']
    #allocation5 [shape = 'u8[24576]{0}', space=vmem, size = 0x6000, scoped, tag = 'input window, operand 1, single buffered']
    #allocation6 [shape = 's32[1]{0}', space=sflag, size = 0x4, scoped, tag = 'scoped memory for tpu_custom_call.1']
    #allocation7 [shape = 'u8[2048]{0}', space=vmem, size = 0x800, scoped, tag = 'input window, operand 4, single buffered']
    #allocation8 [shape = 'u8[4096]{0}', space=vmem, size = 0x1000, scoped, tag = 'output window, operand 0, single buffered']
    %11 = vsyncpa [#allocation3], 0
    %12 = vsyncpa [#allocation6], 0
    %13 = vsyncpa [#allocation4], 0
    // Predicated region
    $region2: #{tpu_custom_call.1} parent=1 // pred_check
      _
    $region3: #{tpu_custom_call.1} parent=1 // pred_check_branch
      %15 = sbr.rel (0) target = $region5
    $region4: #{tpu_custom_call.1} parent=1 // pred_region
      %s17 = ssub.s32 128, 128
      %18 = vsyncadd [#allocation3], %s17
      %s20 = sshll.u32 [#allocation2], 4
      %s21 = int_to_ptr.vmem [resolvable:$true] %s20
      %23 = dma.hbm_to_vmem [thread:$0]  %s0, 128, %s21, [#allocation3]
    $region5: #{tpu_custom_call.1} parent=1 // pred_fallthru
      _
    // Predicated region
    $region6: #{tpu_custom_call.1} parent=1 // pred_check
      _
    $region7: #{tpu_custom_call.1} parent=1 // pred_check_branch
      %25 = sbr.rel (0) target = $region9
    $region8: #{tpu_custom_call.1} parent=1 // pred_region
      %s27 = ssub.s32 768, 768
      %28 = vsyncadd [#allocation6], %s27
      %s29 = sshll.u32 [#allocation5], 4
      %s30 = int_to_ptr.vmem [resolvable:$true] %s29
      %35 = dma.hbm_to_vmem [thread:$0]  %s1, 768, %s30, [#allocation6], 128, 128, 8
    $region9: #{tpu_custom_call.1} parent=1 // pred_fallthru
      _
    // Predicated region
    $region10: #{tpu_custom_call.1} parent=1 // pred_check
      _
    $region11: #{tpu_custom_call.1} parent=1 // pred_check_branch
      %37 = sbr.rel (0) target = $region13
    $region12: #{tpu_custom_call.1} parent=1 // pred_region
      _
    $region13: #{tpu_custom_call.1} parent=1 // pred_fallthru
      _
    // Predicated region
    $region14: #{tpu_custom_call.1} parent=1 // pred_check
      _
    $region15: #{tpu_custom_call.1} parent=1 // pred_check_branch
      %39 = sbr.rel (0) target = $region17
    $region16: #{tpu_custom_call.1} parent=1 // pred_region
      _
    $region17: #{tpu_custom_call.1} parent=1 // pred_fallthru
      _
    // Predicated region
    $region18: #{tpu_custom_call.1} parent=1 // pred_check
      _
    $region19: #{tpu_custom_call.1} parent=1 // pred_check_branch
      %41 = sbr.rel (0) target = $region21
    $region20: #{tpu_custom_call.1} parent=1 // pred_region
      %s43 = ssub.s32 64, 64
      %44 = vsyncadd [#allocation6], %s43
      %s46 = sshll.u32 [#allocation7], 4
      %s47 = int_to_ptr.vmem [resolvable:$true] %s46
      %49 = dma.hbm_to_vmem [thread:$0]  %s4, 64, %s47, [#allocation6]
    $region21: #{tpu_custom_call.1} parent=1 // pred_fallthru
      _
    // Predicated region
    $region22: #{tpu_custom_call.1} parent=1 // pred_check
      _
    $region23: #{tpu_custom_call.1} parent=1 // pred_check_branch
      %51 = sbr.rel (0) target = $region25
    $region24: #{tpu_custom_call.1} parent=1 // pred_region
      _
    $region25: #{tpu_custom_call.1} parent=1 // pred_fallthru
      _
    // Predicated region
    $region26: #{tpu_custom_call.1} parent=1 // pred_check
      _
    $region27: #{tpu_custom_call.1} parent=1 // pred_check_branch
      %53 = sbr.rel (0) target = $region29
    $region28: #{tpu_custom_call.1} parent=1 // pred_region
      %54 = dma.done [#allocation3], 128
    $region29: #{tpu_custom_call.1} parent=1 // pred_fallthru
      _
    // Predicated region
    $region30: #{tpu_custom_call.1} parent=1 // pred_check
      _
    $region31: #{tpu_custom_call.1} parent=1 // pred_check_branch
      %56 = sbr.rel (0) target = $region33
    $region32: #{tpu_custom_call.1} parent=1 // pred_region
      %57 = dma.done [#allocation6], 768
    $region33: #{tpu_custom_call.1} parent=1 // pred_fallthru
      _
    // Predicated region
    $region34: #{tpu_custom_call.1} parent=1 // pred_check
      _
    $region35: #{tpu_custom_call.1} parent=1 // pred_check_branch
      %59 = sbr.rel (0) target = $region37
    $region36: #{tpu_custom_call.1} parent=1 // pred_region
      %60 = dma.done [#allocation6], 64
    $region37: #{tpu_custom_call.1} parent=1 // pred_fallthru
      _
    %v61 = vld [vmem:[#allocation2] sm:$0xff]
    %v62 = vld [vmem:[#allocation5] sm:$0xff]
    %v63 = vld [vmem:[#allocation5 + $0x8] sm:$0xff]
    %v64 = vld [vmem:[#allocation5 + $0x10] sm:$0xff]
    %v65 = vld [vmem:[#allocation5 + $0x18] sm:$0xff]
    %v66 = vld [vmem:[#allocation5 + $0x20] sm:$0xff]
    %v67 = vld [vmem:[#allocation5 + $0x28] sm:$0xf]
    %vm68 = vcmask 359424
    %v70 = vsel %vm68, %v61, 0
    %vm72 = vcmask 1043456
    %v74 = vsel %vm72, %v67, 0
    %76 = vmatprep.subr.mxu0 0.0
    %77 = vmatpush1.msra.mxu0 0.0
    %78 = vmatprep.subr.mxu0 0.0
    %79 = vmatpush1.msra.mxu0 0.0
    %80 = vmatprep.subr.mxu0 0.0
    %81 = vmatpush1.msra.mxu0 0.0
    %82 = vmatprep.subr.mxu0 0.0
    %83 = vmatpush1.msra.mxu0 0.0
    %84 = vmatprep.subr.mxu0 0.0
    %85 = vmatpush1.msra.mxu0 0.0
    %86 = vmatprep.subr.mxu0 0.0
    %87 = vmatpush1.msra.mxu0 0.0
    %88 = vmatprep.subr.mxu0 0.0
    %89 = vmatpush1.msra.mxu0 0.0
    %90 = vmatprep.subr.mxu0 0.0
    %91 = vmatpush1.msra.mxu0 0.0
    %92 = vmatprep.subr.mxu0 0.0
    %93 = vmatpush1.msra.mxu0 0.0
    %94 = vmatprep.subr.mxu0 0.0
    %95 = vmatpush1.msra.mxu0 0.0
    %96 = vmatprep.subr.mxu0 0.0
    %97 = vmatpush1.msra.mxu0 %v74
    %98 = vmatprep.subr.mxu0 0.0
    %99 = vmatpush1.msra.mxu0 %v66
    %100 = vmatprep.subr.mxu0 0.0
    %101 = vmatpush1.msra.mxu0 %v65
    %102 = vmatprep.subr.mxu0 0.0
    %103 = vmatpush1.msra.mxu0 %v64
    %104 = vmatprep.subr.mxu0 0.0
    %105 = vmatpush1.msra.mxu0 %v63
    %106 = vmatprep.subr.mxu0 0.0
    %107 = vmatpush1.msra.mxu0 %v62
    %108 = vmatprep.subr.mxu0 0.0
    %109 = vmatpush2.msra.mxu0 0.0
    %110 = vmatprep.subr.mxu0 0.0
    %111 = vmatpush2.msra.mxu0 0.0
    %112 = vmatprep.subr.mxu0 0.0
    %113 = vmatpush2.msra.mxu0 0.0
    %114 = vmatprep.subr.mxu0 0.0
    %115 = vmatpush2.msra.mxu0 0.0
    %116 = vmatprep.subr.mxu0 0.0
    %117 = vmatpush2.msra.mxu0 0.0
    %118 = vmatprep.subr.mxu0 0.0
    %119 = vmatpush2.msra.mxu0 0.0
    %120 = vmatprep.subr.mxu0 0.0
    %121 = vmatpush2.msra.mxu0 0.0
    %122 = vmatprep.subr.mxu0 0.0
    %123 = vmatpush2.msra.mxu0 0.0
    %124 = vmatprep.subr.mxu0 0.0
    %125 = vmatpush2.msra.mxu0 0.0
    %126 = vmatprep.subr.mxu0 0.0
    %127 = vmatpush2.msra.mxu0 0.0
    %128 = vmatprep.subr.mxu0 0.0
    %129 = vmatpush2.msra.mxu0 0.0
    %130 = vmatprep.subr.mxu0 0.0
    %131 = vmatpush2.msra.mxu0 0.0
    %132 = vmatprep.subr.mxu0 0.0
    %133 = vmatpush2.msra.mxu0 0.0
    %134 = vmatprep.subr.mxu0 0.0
    %135 = vmatpush2.msra.mxu0 0.0
    %136 = vmatprep.subr.mxu0 0.0
    %137 = vmatpush2.msra.mxu0 0.0
    %138 = vmatprep.subr.mxu0 0.0
    %139 = vmatpush2.msra.mxu0 0.0
    %140 = vmatprep.mubr.f32.mxu0 0.0
    %141 = vmatmul.mubr.f32.gmra.mxu0 %v70
    %v142 = vpop.f32.mrf.mxu0
    %v143 = vadd.f32 0.0, %v142
    %v144 = vpop.f32.mrf.mxu0
    %145 = vdwg.mxu0
    %v146 = vld [vmem:[#allocation7] sm:$0x1]
    %v147 = vld [vmem:[#allocation7 + $0x1] sm:$0x1]
    %v148 = vld [vmem:[%s5] sm:$0xff]
    %v149 = vrot.slane %v143, 4
    %v150 = vadd.f32 %v143, %v149
    %v151 = vrot.slane %v150, 2
    %v152 = vadd.f32 %v150, %v151
    %v153 = vrot.slane %v152, 1
    %v154 = vadd.f32 %v152, %v153
    %v155 = vrcp.pop 8.0
    %v156 = vmul.f32 %v154, %v155
    %v157 = vsub.f32 %v143, %v156
    %v158 = vmul.f32 %v157, %v157
    %v159 = vrot.slane %v158, 4
    %v160 = vadd.f32 %v158, %v159
    %v161 = vrot.slane %v160, 2
    %v162 = vadd.f32 %v160, %v161
    %v163 = vrot.slane %v162, 1
    %v164 = vadd.f32 %v162, %v163
    %v165 = vmul.f32 %v164, %v155
    %v166 = vadd.f32 %v165, 1e-05
    %v167 = vrsqrt.pop %v166
    %v168 = vmul.f32 %v157, %v167
    %v169 = vlaneseq
    %v170 = vshrl.u32 %v169, 7
    %v171 = vsub.s32 0, %v170
    %v172 = vrot.slane %v146, %v171
    %v173 = vmul.f32 %v168, %v172
    %v174 = vlaneseq
    %v175 = vshrl.u32 %v174, 7
    %v176 = vsub.s32 0, %v175
    %v177 = vrot.slane %v147, %v176
    %v178 = vadd.f32 %v173, %v177
    %v179 = vmul.f32 %v178, 0.2
    %v180 = vmax.f32 %v178, %v179
    %vm181 = vcmp.lt.f32.partialorder %v148, 0.2
    %v182 = vmul.f32 %v180, 5.0
    %v183 = vsel %vm181, %v182, 0.0
    %v184 = vld [vmem:[%s2] sm:$0xff]
    %v185 = vld [vmem:[%s2 + $0x8] sm:$0xff]
    %v186 = vld [vmem:[%s2 + $0x10] sm:$0xff]
    %v187 = vld [vmem:[%s2 + $0x18] sm:$0xff]
    %v188 = vld [vmem:[%s2 + $0x20] sm:$0xff]
    %v189 = vld [vmem:[%s2 + $0x28] sm:$0xff]
    %v190 = vld [vmem:[%s2 + $0x30] sm:$0xff]
    %v191 = vld [vmem:[%s2 + $0x38] sm:$0xff]
    %v192 = vld [vmem:[%s2 + $0x40] sm:$0xff]
    %v193 = vld [vmem:[%s2 + $0x48] sm:$0xff]
    %v194 = vld [vmem:[%s2 + $0x50] sm:$0xff]
    %v195 = vld [vmem:[%s2 + $0x58] sm:$0xff]
    %v196 = vld [vmem:[%s2 + $0x60] sm:$0xff]
    %v197 = vld [vmem:[%s2 + $0x68] sm:$0xff]
    %v198 = vld [vmem:[%s2 + $0x70] sm:$0xff]
    %v199 = vld [vmem:[%s2 + $0x78] sm:$0xff]
    %200 = vmatprep.subr.mxu0 0.0
    %201 = vmatpush1.msra.mxu0 %v199
    %202 = vmatprep.subr.mxu0 0.0
    %203 = vmatpush1.msra.mxu0 %v198
    %204 = vmatprep.subr.mxu0 0.0
    %205 = vmatpush1.msra.mxu0 %v197
    %206 = vmatprep.subr.mxu0 0.0
    %207 = vmatpush1.msra.mxu0 %v196
    %208 = vmatprep.subr.mxu0 0.0
    %209 = vmatpush1.msra.mxu0 %v195
    %210 = vmatprep.subr.mxu0 0.0
    %211 = vmatpush1.msra.mxu0 %v194
    %212 = vmatprep.subr.mxu0 0.0
    %213 = vmatpush1.msra.mxu0 %v193
    %214 = vmatprep.subr.mxu0 0.0
    %215 = vmatpush1.msra.mxu0 %v192
    %216 = vmatprep.subr.mxu0 0.0
    %217 = vmatpush1.msra.mxu0 %v191
    %218 = vmatprep.subr.mxu0 0.0
    %219 = vmatpush1.msra.mxu0 %v190
    %220 = vmatprep.subr.mxu0 0.0
    %221 = vmatpush1.msra.mxu0 %v189
    %222 = vmatprep.subr.mxu0 0.0
    %223 = vmatpush1.msra.mxu0 %v188
    %224 = vmatprep.subr.mxu0 0.0
    %225 = vmatpush1.msra.mxu0 %v187
    %226 = vmatprep.subr.mxu0 0.0
    %227 = vmatpush1.msra.mxu0 %v186
    %228 = vmatprep.subr.mxu0 0.0
    %229 = vmatpush1.msra.mxu0 %v185
    %230 = vmatprep.subr.mxu0 0.0
    %231 = vmatpush1.msra.mxu0 %v184
    %232 = vmatprep.subr.mxu0 0.0
    %233 = vmatpush2.msra.mxu0 0.0
    %234 = vmatprep.subr.mxu0 0.0
    %235 = vmatpush2.msra.mxu0 0.0
    %236 = vmatprep.subr.mxu0 0.0
    %237 = vmatpush2.msra.mxu0 0.0
    %238 = vmatprep.subr.mxu0 0.0
    %239 = vmatpush2.msra.mxu0 0.0
    %240 = vmatprep.subr.mxu0 0.0
    %241 = vmatpush2.msra.mxu0 0.0
    %242 = vmatprep.subr.mxu0 0.0
    %243 = vmatpush2.msra.mxu0 0.0
    %244 = vmatprep.subr.mxu0 0.0
    %245 = vmatpush2.msra.mxu0 0.0
    %246 = vmatprep.subr.mxu0 0.0
    %247 = vmatpush2.msra.mxu0 0.0
    %248 = vmatprep.subr.mxu0 0.0
    %249 = vmatpush2.msra.mxu0 0.0
    %250 = vmatprep.subr.mxu0 0.0
    %251 = vmatpush2.msra.mxu0 0.0
    %252 = vmatprep.subr.mxu0 0.0
    %253 = vmatpush2.msra.mxu0 0.0
    %254 = vmatprep.subr.mxu0 0.0
    %255 = vmatpush2.msra.mxu0 0.0
    %256 = vmatprep.subr.mxu0 0.0
    %257 = vmatpush2.msra.mxu0 0.0
    %258 = vmatprep.subr.mxu0 0.0
    %259 = vmatpush2.msra.mxu0 0.0
    %260 = vmatprep.subr.mxu0 0.0
    %261 = vmatpush2.msra.mxu0 0.0
    %262 = vmatprep.subr.mxu0 0.0
    %263 = vmatpush2.msra.mxu0 0.0
    %264 = vmatprep.mubr.f32.mxu0 0.0
    %265 = vmatmul.mubr.f32.gmra.mxu0 %v183
    %v266 = vpop.f32.mrf.mxu0
    %v267 = vadd.f32 0.0, %v266
    %v268 = vpop.f32.mrf.mxu0
    %269 = vdwg.mxu0
    %v270 = vld [vmem:[#allocation7 + $0x2] sm:$0x1]
    %v271 = vld [vmem:[#allocation7 + $0x3] sm:$0x1]
    %v272 = vld [vmem:[%s5 + $0x8] sm:$0xff]
    %v273 = vrot.slane %v267, 4
    %v274 = vadd.f32 %v267, %v273
    %v275 = vrot.slane %v274, 2
    %v276 = vadd.f32 %v274, %v275
    %v277 = vrot.slane %v276, 1
    %v278 = vadd.f32 %v276, %v277
    %v279 = vmul.f32 %v278, %v155
    %v280 = vsub.f32 %v267, %v279
    %v281 = vmul.f32 %v280, %v280
    %v282 = vrot.slane %v281, 4
    %v283 = vadd.f32 %v281, %v282
    %v284 = vrot.slane %v283, 2
    %v285 = vadd.f32 %v283, %v284
    %v286 = vrot.slane %v285, 1
    %v287 = vadd.f32 %v285, %v286
    %v288 = vmul.f32 %v287, %v155
    %v289 = vadd.f32 %v288, 1e-05
    %v290 = vrsqrt.pop %v289
    %v291 = vmul.f32 %v280, %v290
    %v292 = vlaneseq
    %v293 = vshrl.u32 %v292, 7
    %v294 = vsub.s32 0, %v293
    %v295 = vrot.slane %v270, %v294
    %v296 = vmul.f32 %v291, %v295
    %v297 = vlaneseq
    %v298 = vshrl.u32 %v297, 7
    %v299 = vsub.s32 0, %v298
    %v300 = vrot.slane %v271, %v299
    %v301 = vadd.f32 %v296, %v300
    %v302 = vmul.f32 %v301, 0.2
    %v303 = vmax.f32 %v301, %v302
    %vm304 = vcmp.lt.f32.partialorder %v272, 0.2
    %v305 = vmul.f32 %v303, 5.0
    %v306 = vsel %vm304, %v305, 0.0
    %v307 = vld [vmem:[%s3] sm:$0xff]
    %v308 = vld [vmem:[%s3 + $0x8] sm:$0xff]
    %v309 = vld [vmem:[%s3 + $0x10] sm:$0xff]
    %v310 = vld [vmem:[%s3 + $0x18] sm:$0xff]
    %v311 = vld [vmem:[%s3 + $0x20] sm:$0xff]
    %v312 = vld [vmem:[%s3 + $0x28] sm:$0xff]
    %v313 = vld [vmem:[%s3 + $0x30] sm:$0xff]
    %v314 = vld [vmem:[%s3 + $0x38] sm:$0xff]
    %v315 = vld [vmem:[%s3 + $0x40] sm:$0xff]
    %v316 = vld [vmem:[%s3 + $0x48] sm:$0xff]
    %v317 = vld [vmem:[%s3 + $0x50] sm:$0xff]
    %v318 = vld [vmem:[%s3 + $0x58] sm:$0xff]
    %v319 = vld [vmem:[%s3 + $0x60] sm:$0xff]
    %v320 = vld [vmem:[%s3 + $0x68] sm:$0xff]
    %v321 = vld [vmem:[%s3 + $0x70] sm:$0xff]
    %v322 = vld [vmem:[%s3 + $0x78] sm:$0xff]
    %323 = vmatprep.subr.mxu0 0.0
    %324 = vmatpush1.msra.mxu0 %v322
    %325 = vmatprep.subr.mxu0 0.0
    %326 = vmatpush1.msra.mxu0 %v321
    %327 = vmatprep.subr.mxu0 0.0
    %328 = vmatpush1.msra.mxu0 %v320
    %329 = vmatprep.subr.mxu0 0.0
    %330 = vmatpush1.msra.mxu0 %v319
    %331 = vmatprep.subr.mxu0 0.0
    %332 = vmatpush1.msra.mxu0 %v318
    %333 = vmatprep.subr.mxu0 0.0
    %334 = vmatpush1.msra.mxu0 %v317
    %335 = vmatprep.subr.mxu0 0.0
    %336 = vmatpush1.msra.mxu0 %v316
    %337 = vmatprep.subr.mxu0 0.0
    %338 = vmatpush1.msra.mxu0 %v315
    %339 = vmatprep.subr.mxu0 0.0
    %340 = vmatpush1.msra.mxu0 %v314
    %341 = vmatprep.subr.mxu0 0.0
    %342 = vmatpush1.msra.mxu0 %v313
    %343 = vmatprep.subr.mxu0 0.0
    %344 = vmatpush1.msra.mxu0 %v312
    %345 = vmatprep.subr.mxu0 0.0
    %346 = vmatpush1.msra.mxu0 %v311
    %347 = vmatprep.subr.mxu0 0.0
    %348 = vmatpush1.msra.mxu0 %v310
    %349 = vmatprep.subr.mxu0 0.0
    %350 = vmatpush1.msra.mxu0 %v309
    %351 = vmatprep.subr.mxu0 0.0
    %352 = vmatpush1.msra.mxu0 %v308
    %353 = vmatprep.subr.mxu0 0.0
    %354 = vmatpush1.msra.mxu0 %v307
    %355 = vmatprep.subr.mxu0 0.0
    %356 = vmatpush2.msra.mxu0 0.0
    %357 = vmatprep.subr.mxu0 0.0
    %358 = vmatpush2.msra.mxu0 0.0
    %359 = vmatprep.subr.mxu0 0.0
    %360 = vmatpush2.msra.mxu0 0.0
    %361 = vmatprep.subr.mxu0 0.0
    %362 = vmatpush2.msra.mxu0 0.0
    %363 = vmatprep.subr.mxu0 0.0
    %364 = vmatpush2.msra.mxu0 0.0
    %365 = vmatprep.subr.mxu0 0.0
    %366 = vmatpush2.msra.mxu0 0.0
    %367 = vmatprep.subr.mxu0 0.0
    %368 = vmatpush2.msra.mxu0 0.0
    %369 = vmatprep.subr.mxu0 0.0
    %370 = vmatpush2.msra.mxu0 0.0
    %371 = vmatprep.subr.mxu0 0.0
    %372 = vmatpush2.msra.mxu0 0.0
    %373 = vmatprep.subr.mxu0 0.0
    %374 = vmatpush2.msra.mxu0 0.0
    %375 = vmatprep.subr.mxu0 0.0
    %376 = vmatpush2.msra.mxu0 0.0
    %377 = vmatprep.subr.mxu0 0.0
    %378 = vmatpush2.msra.mxu0 0.0
    %379 = vmatprep.subr.mxu0 0.0
    %380 = vmatpush2.msra.mxu0 0.0
    %381 = vmatprep.subr.mxu0 0.0
    %382 = vmatpush2.msra.mxu0 0.0
    %383 = vmatprep.subr.mxu0 0.0
    %384 = vmatpush2.msra.mxu0 0.0
    %385 = vmatprep.subr.mxu0 0.0
    %386 = vmatpush2.msra.mxu0 0.0
    %387 = vmatprep.mubr.f32.mxu0 0.0
    %388 = vmatmul.mubr.f32.gmra.mxu0 %v306
    %v389 = vpop.f32.mrf.mxu0
    %v390 = vadd.f32 0.0, %v389
    %v391 = vpop.f32.mrf.mxu0
    %392 = vdwg.mxu0
    %v393 = vlaneseq
    %v394 = vand.u32 %v393, 127
    %vm395 = vcmp.eq.s32.totalorder %v394, 0
    %vm396 = vcmp.eq.s32.totalorder %v394, 4
    %vm397 = vmor %vm395, %vm396
    %v398 = vsel %vm397, 1.0, 0.0
    %v399 = vxor.u32 %v390, 2147483648
    %v400 = vmul.f32 %v399, 1.442695
    %v401 = vpow.pop %v400
    %v402 = vadd.f32 %v401, 1.0
    %v403 = vrcp.pop %v402
    %v404 = vmul.f32 1.0, %v403
    %v405 = vsub.f32 %v404, -0.5
    %v406 = vmul.f32 %v405, 0.5
    %v407 = vadd.f32 %v406, %v398
    %v408 = vmax.f32 %v61, 1e-06
    %v409 = vmin.f32 %v408, 0.999999
    %v410 = vlog2.pop %v409
    %v411 = vmul.f32 %v410, 0.6931472
    %v412 = vsub.f32 1.0, %v409
    %v413 = vlog2.pop %v412
    %v414 = vmul.f32 %v413, 0.6931472
    %v415 = vsub.f32 %v411, %v414
    %416 = vrot.lane.b32.xlu0 %v61, 1
    %v417 = vpop.permute.xlu0 %416
    %v419 = vadd.f32 %v415, %v417
    %v420 = vrcp.pop 0.05
    %v421 = vmul.f32 %v419, %v420
    %v422 = vxor.u32 %v421, 2147483648
    %v423 = vmul.f32 %v422, 1.442695
    %v424 = vpow.pop %v423
    %v425 = vadd.f32 %v424, 1.0
    %v426 = vrcp.pop %v425
    %v427 = vmul.f32 1.0, %v426
    %v428 = vsub.f32 1.0, %v427
    %430 = vset.pattern.permute.xlu0 43
    %431 = vperm.xlu0 %430, %v428
    %v432 = vpop.permute.xlu0 %431
    %v434 = vmul.f32 %v432, %v398
    %436 = vset.pattern.permute.xlu0 43
    %437 = vperm.xlu0 %436, %v427
    %v438 = vpop.permute.xlu0 %437
    %v440 = vmul.f32 %v438, %v407
    %v441 = vadd.f32 %v434, %v440
    %vm442 = vcmask 64512
    %443 = vst.msk [vmem:[#allocation8] sm:$0xff] %vm442, %v441
    // Predicated region
    $region38: #{tpu_custom_call.1} parent=1 // pred_check
      _
    $region39: #{tpu_custom_call.1} parent=1 // pred_check_branch
      %445 = sbr.rel (0) target = $region41
    $region40: #{tpu_custom_call.1} parent=1 // pred_region
      %s447 = ssub.s32 128, 128
      %448 = vsyncadd [#allocation4], %s447
      %s450 = sshll.u32 [#allocation8], 4
      %s451 = int_to_ptr.vmem [resolvable:$true] %s450
      %453 = dma.vmem_to_hbm [thread:$0]  %s451, 128, %s6, [#allocation4]
    $region41: #{tpu_custom_call.1} parent=1 // pred_fallthru
      _
    // Predicated region
    $region42: #{tpu_custom_call.1} parent=1 // pred_check
      _
    $region43: #{tpu_custom_call.1} parent=1 // pred_check_branch
      %455 = sbr.rel (0) target = $region45
    $region44: #{tpu_custom_call.1} parent=1 // pred_region
      %456 = dma.done [#allocation4], 128
    $region45: #{tpu_custom_call.1} parent=1 // pred_fallthru
      _
    %457 = vsyncpa [#allocation3], 1
    %458 = vsyncpa [#allocation6], 1
    %459 = vsyncpa [#allocation4], 1

</llo_original>
